<compile_context>
chip_gen: v5e
topology: v5e:2x2
jax: 0.10.0
libtpu: 0.0.40
codegen_flags: <defaults>
</compile_context>

<pallas_src>
import functools
import math

import jax
import jax.numpy as jnp
from jax import lax
from jax.experimental import pallas as pl
from jax.experimental.pallas import tpu as pltpu


def _ntxent_kernel(q_ref, p_ref, k_ref, loss_ref, acc_ref, *,
                   shift: float, exp_in_bf16: bool):
    """One (row-block i, col-block j) grid step.

    q_ref:    (TR, D) prenormalized, 1/sqrt(T)-scaled row tile of z (queries)
    p_ref:    (TR, D) partner row tile (rows shifted by N via the index_map)
    k_ref:    (TC, D) prenormalized col tile of z (keys)
    loss_ref: (TR, 1) per-row loss output (written once, at the last col step)
    acc_ref:  (TR, W) f32 lane-dense denominator accumulator (W = 128 or TC)
    """
    j = pl.program_id(1)
    tc = k_ref.shape[0]
    acc_w = acc_ref.shape[1]

    q = q_ref[...]
    # sim[r, c] = cos(q_r, k_c) / T (temperature already folded into operands).
    # Contraction on the last dim of both operands -> no XLU transpose; f32 acc.
    sim = lax.dot_general(q, k_ref[...],
                          dimension_numbers=(((1,), (1,)), ((), ())),
                          preferred_element_type=jnp.float32)      # (TR, TC) f32
    if shift:
        # Overflow guard for tiny temperatures only (trace-time conditional).
        sim = sim - shift

    if exp_in_bf16:
        # v6e/v7x EUP runs bf16 ~2x; keep the accumulation in f32.
        e = jnp.exp(sim.astype(jnp.bfloat16)).astype(jnp.float32)
    else:
        e = jnp.exp(sim)

    # Lane-dense VPU accumulation: fold TC lanes into W-lane groups with plain
    # vreg adds (static, lane-aligned slices). No cross-lane XLU op in the inner
    # loop; the single lane reduce happens at finalize.
    if acc_w == tc:
        part = e
    else:
        part = e[:, 0:acc_w]
        for c in range(1, tc // acc_w):
            part = part + e[:, c * acc_w:(c + 1) * acc_w]

    @pl.when(j == 0)
    def _init():
        acc_ref[...] = jnp.zeros_like(acc_ref)

    acc_ref[...] += part

    @pl.when(j == pl.num_programs(1) - 1)
    def _finalize():
        # Single cross-lane reduce per row block.
        denom = jnp.sum(acc_ref[...], axis=-1, keepdims=True)       # (TR, 1)

        qf = q.astype(jnp.float32)
        pf = p_ref[...].astype(jnp.float32)
        # Positive logit cos(r, (r+N) mod 2N) / T via the partner tile.
        pos = jnp.sum(qf * pf, axis=-1, keepdims=True)              # (TR, 1)
        # Self-similarity term from the exact values fed to the MXU — removes
        # the diagonal contribution without materializing a mask.
        self_t = jnp.sum(qf * qf, axis=-1, keepdims=True)           # (TR, 1)

        self_term = self_t - shift if shift else self_t
        denom = denom - jnp.exp(self_term)
        logd = jnp.log(denom)
        if shift:
            logd = logd + shift                                     # undo shift
        # -log(exp(pos) / denom) = log(denom) - pos
        loss_ref[...] = logd - pos


def _largest_divisor_block(dim: int, cap: int, quantum: int) -> int:
    """Largest b <= cap with b | dim and b % quantum == 0; falls back to the
    largest divisor of dim <= cap if no quantum-aligned divisor exists."""
    cap = max(min(cap, dim), 1)
    best = None
    for b in range(cap, 0, -1):
        if dim % b:
            continue
        if b % quantum == 0:
            return b
        if best is None:
            best = b
    return best if best is not None else dim


def _vmem_budget_bytes() -> int:
    """Per-generation VMEM budget: ~65% of physical capacity (v7x: ~42 MiB of
    its 64 MiB; v5e/v6e: ~83 MiB of 128 MiB), capped at 96 MiB."""
    phys = 64 * 2**20
    try:
        info = pltpu.get_tpu_info()
        cap = int(getattr(info, "vmem_capacity_bytes", 0))
        if cap > 0:
            phys = cap
    except Exception:
        pass
    return min(int(phys * 0.65), 96 * 2**20)


def _bf16_eup_available() -> bool:
    """bf16 transcendental path exists on v6e/v7x (NOT v5e)."""
    try:
        kind = jax.devices()[0].device_kind.lower()
    except Exception:
        return False
    return ("v6" in kind) or ("v7" in kind)


def ntxent_loss(z_i: jax.Array, z_j: jax.Array, temperature: float = 1.0,
                *, row_block: int | None = None, col_block: int | None = None,
                use_bf16_matmul: bool = True,
                exp_in_bf16: bool | None = None) -> jax.Array:
    assert z_i.shape == z_j.shape and z_i.ndim == 2
    assert temperature > 0.0
    n, d = z_i.shape
    two_n = 2 * n
    # Partner tiles are addressed by shifting the row-block index by N/TR, so
    # TR | N is required; keeping blocks 8-aligned then needs 8 | N.
    # TODO(synk): fall back to an explicit rolled-partner input array for N % 8 != 0.
    assert n % 8 == 0, "ntxent_loss requires batch size N to be a multiple of 8"

    inv_t = 1.0 / float(temperature)
    # bf16 cos error is magnified by 1/T inside exp -> force f32 MXU for small T.
    use_bf16 = bool(use_bf16_matmul) and (temperature >= 0.2)
    mm_dtype = jnp.bfloat16 if use_bf16 else jnp.float32
    if exp_in_bf16 is None:
        exp_in_bf16 = use_bf16 and _bf16_eup_available()
    # f32 exp overflows near 88; only emit the per-element shift for tiny T.
    shift = inv_t if inv_t > 80.0 else 0.0

    # Prenormalize ONCE in XLA (cosine norm, eps matching F.cosine_similarity),
    # fold 1/sqrt(T) into each operand, and cast to the matmul dtype so the
    # kernel streams bf16 and does no per-tile normalization work.
    z = jnp.concatenate([z_i, z_j], axis=0).astype(jnp.float32)     # (2N, D)
    ss = jnp.sum(z * z, axis=-1, keepdims=True)
    zn = (z * (lax.rsqrt(jnp.maximum(ss, 1e-16)) * (1.0 / math.sqrt(temperature)))
          ).astype(mm_dtype)

    # ---- tile selection, sized to the per-generation VMEM budget ----
    bpe = 2 if use_bf16 else 4
    budget = _vmem_budget_bytes()
    usable = int(budget * 0.85)                  # slack for compiler scratch

    tc_cap = max(col_block, 8) if col_block is not None else 512
    tc = _largest_divisor_block(two_n, tc_cap, 128)
    if tc % 8 != 0 and tc != two_n:
        tc = _largest_divisor_block(two_n, tc_cap, 8)
    acc_w = 128 if tc % 128 == 0 else tc

    def _fits(tr):
        bufs = 2 * d * bpe * (2 * tr + tc)       # double-buffered q / partner / k
        return bufs + tr * acc_w * 4 + 2 * tr * 4 <= usable

    tr_cap = max(row_block, 8) if row_block is not None else 2048
    tr = _largest_divisor_block(n, tr_cap, 8)
    while tr > 8 and not _fits(tr):
        tr = _largest_divisor_block(n, tr // 2, 8)

    grid_rows = two_n // tr
    grid_cols = two_n // tc
    half = grid_rows // 2                        # = n // tr, partner block offset

    kernel = functools.partial(_ntxent_kernel, shift=float(shift),
                               exp_in_bf16=bool(exp_in_bf16))

    per_row = pl.pallas_call(
        kernel,
        out_shape=jax.ShapeDtypeStruct((two_n, 1), jnp.float32),
        grid_spec=pltpu.PrefetchScalarGridSpec(
            num_scalar_prefetch=0,
            grid=(grid_rows, grid_cols),
            in_specs=[
                pl.BlockSpec((tr, d), lambda i, j: (i, 0)),                       # q rows
                pl.BlockSpec((tr, d), lambda i, j: ((i + half) % grid_rows, 0)),  # partners
                pl.BlockSpec((tc, d), lambda i, j: (j, 0)),                       # k cols
            ],
            out_specs=pl.BlockSpec((tr, 1), lambda i, j: (i, 0)),
            scratch_shapes=[pltpu.VMEM((tr, acc_w), jnp.float32)],
        ),
        compiler_params=pltpu.CompilerParams(
            dimension_semantics=("parallel", "arbitrary"),
            vmem_limit_bytes=int(budget),
        ),
    )(zn, zn, zn)

    return jnp.sum(per_row) / (2.0 * n)


def _ntxent_reference(z_i, z_j, temperature=1.0):
    # Pure-JAX reference mirroring the PyTorch forward pass exactly (f32).
    n = z_i.shape[0]
    z = jnp.concatenate([z_i, z_j], axis=0).astype(jnp.float32)
    norms = jnp.maximum(jnp.linalg.norm(z, axis=-1, keepdims=True), 1e-8)
    zn = z / norms
    sim = zn @ zn.T
    sim_ij = jnp.diagonal(sim, offset=n)
    sim_ji = jnp.diagonal(sim, offset=-n)
    positives = jnp.concatenate([sim_ij, sim_ji], axis=0)
    mask = (~jnp.eye(2 * n, dtype=bool)).astype(jnp.float32)
    numerator = jnp.exp(positives / temperature)
    denominator = mask * jnp.exp(sim / temperature)
    all_losses = -jnp.log(numerator / jnp.sum(denominator, axis=1))
    return jnp.sum(all_losses) / (2 * n)


if __name__ == "__main__":
    key = jax.random.PRNGKey(0)
    k1, k2 = jax.random.split(key)
    N, D = 128, 32
    z_i = jax.random.normal(k1, (N, D), dtype=jnp.float32)
    z_j = jax.random.normal(k2, (N, D), dtype=jnp.float32)

    # Case 1: many-block grid (16 row x 4 col blocks): exercises the online
    # denominator accumulation, the partner block-shift indexing, and the
    # narrow-column (TC < 128) accumulator path.
    loss1 = ntxent_loss(z_i, z_j, temperature=1.0, row_block=16, col_block=64)
    jax.block_until_ready(loss1)
    ref1 = _ntxent_reference(z_i, z_j, temperature=1.0)
    assert jnp.allclose(loss1, ref1, rtol=2e-2, atol=2e-2), (loss1, ref1)

    # Case 2: auto tiles (TR=128, TC=256): exercises the multi-chunk lane-group
    # accumulation and a non-unit temperature on the bf16 MXU path.
    loss2 = ntxent_loss(z_i, z_j, temperature=0.5)
    jax.block_until_ready(loss2)
    ref2 = _ntxent_reference(z_i, z_j, temperature=0.5)
    assert jnp.allclose(loss2, ref2, rtol=2e-2, atol=2e-2), (loss2, ref2)

    # Case 3: small temperature auto-selects the f32 MXU path (bf16 cos error is
    # magnified by 1/T inside exp); multi-block grid.
    loss3 = ntxent_loss(z_i, z_j, temperature=0.05, row_block=32, col_block=128)
    jax.block_until_ready(loss3)
    ref3 = _ntxent_reference(z_i, z_j, temperature=0.05)
    assert jnp.allclose(loss3, ref3, rtol=2e-2, atol=2e-2), (loss3, ref3)

    print("KERNEL_OK")
</pallas_src>

<mosaic_0001>
module attributes {stable_mosaic.version = 11 : i64} {
  func.func @_ntxent_kernel(%arg0: i32, %arg1: i32, %arg2: memref<16x32xbf16, #tpu.memory_space<vmem>>, %arg3: memref<16x32xbf16, #tpu.memory_space<vmem>>, %arg4: memref<64x32xbf16, #tpu.memory_space<vmem>>, %arg5: memref<16x1xf32, #tpu.memory_space<vmem>>, %arg6: memref<16x64xf32, #tpu.memory_space<vmem>>) attributes {dimension_semantics = [#tpu.dimension_semantics<parallel>, #tpu.dimension_semantics<arbitrary>], iteration_bounds = array<i64: 16, 4>, scalar_prefetch = 0 : i64, scratch_operands = 1 : i64, tpu.core_type = #tpu.core_type<tc>, window_params = [{transform_indices = @transform_0, window_bounds = array<i64: 16, 32>}, {transform_indices = @transform_1, window_bounds = array<i64: 16, 32>}, {transform_indices = @transform_2, window_bounds = array<i64: 64, 32>}, {transform_indices = @transform_3, window_bounds = array<i64: 16, 1>}]} {
    %c0 = arith.constant 0 : index
    %c0_0 = arith.constant 0 : index
    %0 = vector.load %arg2[%c0, %c0_0] : memref<16x32xbf16, #tpu.memory_space<vmem>>, vector<16x32xbf16>
    %c0_1 = arith.constant 0 : index
    %c0_2 = arith.constant 0 : index
    %1 = vector.load %arg4[%c0_1, %c0_2] : memref<64x32xbf16, #tpu.memory_space<vmem>>, vector<64x32xbf16>
    %cst = arith.constant dense<0.000000e+00> : vector<16x64xf32>
    %2 = tpu.matmul %0, %1, %cst {dimension_numbers = #tpu.dot_dimension_numbers<[1], [1], [0], [0], [0, 0, 1, 0], [], []>} : vector<16x32xbf16>, vector<64x32xbf16>, vector<16x64xf32> -> vector<16x64xf32>
    %3 = math.exp %2 : vector<16x64xf32>
    %c0_i32 = arith.constant 0 : i32
    %4 = arith.cmpi eq, %arg1, %c0_i32 : i32
    %5 = arith.extui %4 : i1 to i32
    %c0_i32_3 = arith.constant 0 : i32
    %6 = arith.cmpi ne, %5, %c0_i32_3 : i32
    scf.if %6 {
      %cst_9 = arith.constant 0.000000e+00 : f32
      %13 = vector.broadcast %cst_9 : f32 to vector<16x64xf32>
      %c0_10 = arith.constant 0 : index
      %c0_11 = arith.constant 0 : index
      %14 = vector.load %arg6[%c0_10, %c0_11] : memref<16x64xf32, #tpu.memory_space<vmem>>, vector<16x64xf32>
      tpu.vector_store %arg6[%c0_10, %c0_11], %13 {strides = array<i32>} : memref<16x64xf32, #tpu.memory_space<vmem>>, vector<16x64xf32>,
    } else {
    }
    %c0_4 = arith.constant 0 : index
    %c0_5 = arith.constant 0 : index
    %7 = vector.load %arg6[%c0_4, %c0_5] : memref<16x64xf32, #tpu.memory_space<vmem>>, vector<16x64xf32>
    %8 = arith.addf %7, %3 : vector<16x64xf32>
    %c0_6 = arith.constant 0 : index
    %c0_7 = arith.constant 0 : index
    %9 = vector.load %arg6[%c0_6, %c0_7] : memref<16x64xf32, #tpu.memory_space<vmem>>, vector<16x64xf32>
    tpu.vector_store %arg6[%c0_6, %c0_7], %8 {strides = array<i32>} : memref<16x64xf32, #tpu.memory_space<vmem>>, vector<16x64xf32>,
    %c3_i32 = arith.constant 3 : i32
    %10 = arith.cmpi eq, %arg1, %c3_i32 : i32
    %11 = arith.extui %10 : i1 to i32
    %c0_i32_8 = arith.constant 0 : i32
    %12 = arith.cmpi ne, %11, %c0_i32_8 : i32
    scf.if %12 {
      %c0_9 = arith.constant 0 : index
      %c0_10 = arith.constant 0 : index
      %13 = vector.load %arg6[%c0_9, %c0_10] : memref<16x64xf32, #tpu.memory_space<vmem>>, vector<16x64xf32>
      %cst_11 = arith.constant dense<0.000000e+00> : vector<16xf32>
      %14 = vector.multi_reduction <add>, %13, %cst_11 [1] : vector<16x64xf32> to vector<16xf32>
      %15 = vector.shape_cast %14 : vector<16xf32> to vector<16x1xf32>
      %16 = arith.extf %0 : vector<16x32xbf16> to vector<16x32xf32>
      %c0_12 = arith.constant 0 : index
      %c0_13 = arith.constant 0 : index
      %17 = vector.load %arg3[%c0_12, %c0_13] : memref<16x32xbf16, #tpu.memory_space<vmem>>, vector<16x32xbf16>
      %18 = arith.extf %17 : vector<16x32xbf16> to vector<16x32xf32>
      %19 = arith.mulf %16, %18 : vector<16x32xf32>
      %cst_14 = arith.constant dense<0.000000e+00> : vector<16xf32>
      %20 = vector.multi_reduction <add>, %19, %cst_14 [1] : vector<16x32xf32> to vector<16xf32>
      %21 = vector.shape_cast %20 : vector<16xf32> to vector<16x1xf32>
      %22 = arith.mulf %16, %16 : vector<16x32xf32>
      %cst_15 = arith.constant dense<0.000000e+00> : vector<16xf32>
      %23 = vector.multi_reduction <add>, %22, %cst_15 [1] : vector<16x32xf32> to vector<16xf32>
      %24 = vector.shape_cast %23 : vector<16xf32> to vector<16x1xf32>
      %25 = math.exp %24 : vector<16x1xf32>
      %26 = arith.subf %15, %25 : vector<16x1xf32>
      %27 = math.log %26 : vector<16x1xf32>
      %28 = arith.subf %27, %21 : vector<16x1xf32>
      %c0_16 = arith.constant 0 : index
      %c0_17 = arith.constant 0 : index
      %29 = vector.load %arg5[%c0_16, %c0_17] : memref<16x1xf32, #tpu.memory_space<vmem>>, vector<16x1xf32>
      tpu.vector_store %arg5[%c0_16, %c0_17], %28 {strides = array<i32>} : memref<16x1xf32, #tpu.memory_space<vmem>>, vector<16x1xf32>,
    } else {
    }
    return
  }
  func.func @transform_0(%arg0: i32, %arg1: i32) -> (i32, i32) {
    %c0_i32 = arith.constant 0 : i32
    %c0_i32_0 = arith.constant 0 : i32
    return %arg0, %c0_i32 : i32, i32
  }
  func.func @transform_1(%arg0: i32, %arg1: i32) -> (i32, i32) {
    %c8_i32 = arith.constant 8 : i32
    %0 = arith.addi %arg0, %c8_i32 : i32
    %c16_i32 = arith.constant 16 : i32
    %c0_i32 = arith.constant 0 : i32
    %1 = arith.cmpi eq, %c16_i32, %c0_i32 : i32
    %c1_i32 = arith.constant 1 : i32
    %2 = arith.select %1, %c1_i32, %c16_i32 : i32
    %3 = arith.remsi %0, %2 : i32
    %c0_i32_0 = arith.constant 0 : i32
    %4 = arith.cmpi ne, %3, %c0_i32_0 : i32
    %c0_i32_1 = arith.constant 0 : i32
    %5 = arith.cmpi slt, %3, %c0_i32_1 : i32
    %c0_i32_2 = arith.constant 0 : i32
    %6 = arith.cmpi slt, %2, %c0_i32_2 : i32
    %7 = arith.xori %5, %6 : i1
    %8 = arith.andi %7, %4 : i1
    %9 = arith.addi %3, %2 : i32
    %10 = arith.select %8, %9, %3 : i32
    %c0_i32_3 = arith.constant 0 : i32
    %c0_i32_4 = arith.constant 0 : i32
    return %10, %c0_i32_3 : i32, i32
  }
  func.func @transform_2(%arg0: i32, %arg1: i32) -> (i32, i32) {
    %c0_i32 = arith.constant 0 : i32
    %c0_i32_0 = arith.constant 0 : i32
    return %arg1, %c0_i32 : i32, i32
  }
  func.func @transform_3(%arg0: i32, %arg1: i32) -> (i32, i32) {
    %c0_i32 = arith.constant 0 : i32
    %c0_i32_0 = arith.constant 0 : i32
    return %arg0, %c0_i32 : i32, i32
  }
}

</mosaic_0001>

<llo_original>
// kernel: tpu_custom_call.1
$region0: #{tpu_custom_call.1}
  #allocation0 [shape = 'u32[]', space=smem, size = 0x4, offset = 0x4, fixed_abs, tag = 'smem constant byte address 0x4 - core index']
  #allocation1 [shape = 'u32[72,128]{1,0:T(1,128)}', space=vmem, size = 0x9000, scoped, tag = 'internal scratch']
  #allocation2 [shape = 'f32[16,64]{1,0:T(8,128)}', space=vmem, size = 0x2000, scoped, tag = 'scratch operand']
  %s0 = inlined_call_operand.vmem [shape: bf16[256,32], index: 0, kind: input, shape index: {}]
  %s1 = inlined_call_operand.vmem [shape: bf16[256,32], index: 1, kind: input, shape index: {}]
  %s2 = inlined_call_operand.vmem [shape: bf16[256,32], index: 2, kind: input, shape index: {}]
  %s3 = inlined_call_operand.vmem [shape: f32[256,1], index: 3, kind: output, shape index: {}]
  %s4 = sld [smem:[#allocation0]]
  $region53: #{tpu_custom_call.1} parent=0
    _
  %s6 = ssub.s32 1, %s4
  %s7 = scalar_select 0, %s6, %s4
  loop: start=0, step=1, limit=66
  $region2: #{tpu_custom_call.1} parent=0 // loop_pre_header
    _
  $region3: #{tpu_custom_call.1} parent=0 // loop_header
    %s9 = sphi 0, %s13
    %p10 = scmp.ge.s32.totalorder %s9, 66
    %s16 = sphi 0, %s28
    %s17 = sphi 0, %s24
    %s18 = sphi 0, %s16
    %s19 = sphi 0, %s17
    %s20 = sphi 0, %s18
    %s21 = sphi 0, %s19
    %s31 = sphi 0, %s33
    %s34 = sphi 0, %s31
    %s35 = sphi 0, %s34
    %s51 = sphi 0, %s35
    %s83 = sphi 0, %s85
    %s86 = sphi 0, %s83
    %s87 = sphi 0, %s86
    %s103 = sphi 0, %s87
    %s109 = sphi 0, %s111
    %s112 = sphi 0, %s109
    %s113 = sphi 0, %s112
    %s129 = sphi 0, %s113
    %s135 = sphi 0, %s137
    %s138 = sphi 0, %s135
    %s139 = sphi 0, %s138
    %s155 = sphi 0, %s139
  $region4: #{tpu_custom_call.1} parent=0 // loop_header_branch
    %12 = sbr.rel (%p10) target = $region8
  $region5: #{tpu_custom_call.1} parent=0 // loop_body
    %s14 = ssub.s32 %s9, 1
    %s15 = ssub.s32 %s9, 2
    %s22 = sadd.s32 1, %s17
    %p23 = scmp.ge.s32.totalorder %s22, 4
    %s24 = scalar_select %p23, 0, %s22
    %s25 = sadd.s32 1, %s16
    %s26 = scalar_select %p23, %s25, %s16
    %p27 = scmp.ge.s32.totalorder %s26, 16
    %s28 = scalar_select %p27, 0, %s26
    %s29 = ssub.s32 %s16, %s28
    %p30 = scmp.eq.s32.totalorder %s29, 0
    %s32 = sadd.s32 %s31, 1
    %s33 = scalar_select %p30, %s31, %s32
    %p36 = pneg %p30
    %p37 = scmp.eq.s32.totalorder %s9, 63
    %p38 = por %p36, %p37
    %p39 = scmp.ne.s32.totalorder %s31, %s34
    %p40 = scmp.eq.s32.totalorder %s9, 0
    %p41 = por %p39, %p40
    %p42 = scmp.ne.s32.totalorder %s31, %s34
    %p43 = scmp.eq.s32.totalorder %s14, 63
    %p44 = por %p42, %p43
    %p45 = scmp.ne.s32.totalorder %s34, %s35
    %p46 = scmp.eq.s32.totalorder %s14, 0
    %p47 = por %p45, %p46
    %p48 = scmp.ne.s32.totalorder %s34, %s35
    %p49 = scmp.eq.s32.totalorder %s15, 63
    %p50 = por %p48, %p49
    %p52 = scmp.ne.s32.totalorder %s35, %s51
    %p53 = scmp.eq.s32.totalorder %s15, 0
    %p54 = por %p52, %p53
    %s55 = sadd.s32 %s16, 8
    %p56 = scmp.lt.s32.totalorder %s55, 0
    %s57 = ssub.s32 0, %s55
    %s58 = scalar_select %p56, %s57, %s55
    %s59 = sand.u32 %s58, 15
    %s60 = ssub.s32 0, %s59
    %s61 = scalar_select %p56, %s60, %s59
    %p62 = scmp.ne.s32.totalorder %s61, 0
    %p63 = scmp.lt.s32.totalorder %s61, 0
    %p64 = pnand %p63, %p62
    %p65 = pneg %p64
    %s66 = sadd.s32 %s61, 16
    %s67 = scalar_select %p65, %s66, %s61
    %s68 = sadd.s32 %s28, 8
    %p69 = scmp.lt.s32.totalorder %s68, 0
    %s70 = ssub.s32 0, %s68
    %s71 = scalar_select %p69, %s70, %s68
    %s72 = sand.u32 %s71, 15
    %s73 = ssub.s32 0, %s72
    %s74 = scalar_select %p69, %s73, %s72
    %p75 = scmp.ne.s32.totalorder %s74, 0
    %p76 = scmp.lt.s32.totalorder %s74, 0
    %p77 = pnand %p76, %p75
    %p78 = pneg %p77
    %s79 = sadd.s32 %s74, 16
    %s80 = scalar_select %p78, %s79, %s74
    %s81 = ssub.s32 %s67, %s80
    %p82 = scmp.eq.s32.totalorder %s81, 0
    %s84 = sadd.s32 %s83, 1
    %s85 = scalar_select %p82, %s83, %s84
    %p88 = pneg %p82
    %p89 = scmp.eq.s32.totalorder %s9, 63
    %p90 = por %p88, %p89
    %p91 = scmp.ne.s32.totalorder %s83, %s86
    %p92 = scmp.eq.s32.totalorder %s9, 0
    %p93 = por %p91, %p92
    %p94 = scmp.ne.s32.totalorder %s83, %s86
    %p95 = scmp.eq.s32.totalorder %s14, 63
    %p96 = por %p94, %p95
    %p97 = scmp.ne.s32.totalorder %s86, %s87
    %p98 = scmp.eq.s32.totalorder %s14, 0
    %p99 = por %p97, %p98
    %p100 = scmp.ne.s32.totalorder %s86, %s87
    %p101 = scmp.eq.s32.totalorder %s15, 63
    %p102 = por %p100, %p101
    %p104 = scmp.ne.s32.totalorder %s87, %s103
    %p105 = scmp.eq.s32.totalorder %s15, 0
    %p106 = por %p104, %p105
    %s107 = ssub.s32 %s17, %s24
    %p108 = scmp.eq.s32.totalorder %s107, 0
    %s110 = sadd.s32 %s109, 1
    %s111 = scalar_select %p108, %s109, %s110
    %p114 = pneg %p108
    %p115 = scmp.eq.s32.totalorder %s9, 63
    %p116 = por %p114, %p115
    %p117 = scmp.ne.s32.totalorder %s109, %s112
    %p118 = scmp.eq.s32.totalorder %s9, 0
    %p119 = por %p117, %p118
    %p120 = scmp.ne.s32.totalorder %s109, %s112
    %p121 = scmp.eq.s32.totalorder %s14, 63
    %p122 = por %p120, %p121
    %p123 = scmp.ne.s32.totalorder %s112, %s113
    %p124 = scmp.eq.s32.totalorder %s14, 0
    %p125 = por %p123, %p124
    %p126 = scmp.ne.s32.totalorder %s112, %s113
    %p127 = scmp.eq.s32.totalorder %s15, 63
    %p128 = por %p126, %p127
    %p130 = scmp.ne.s32.totalorder %s113, %s129
    %p131 = scmp.eq.s32.totalorder %s15, 0
    %p132 = por %p130, %p131
    %s133 = ssub.s32 %s16, %s28
    %p134 = scmp.eq.s32.totalorder %s133, 0
    %s136 = sadd.s32 %s135, 1
    %s137 = scalar_select %p134, %s135, %s136
    %p140 = pneg %p134
    %p141 = scmp.eq.s32.totalorder %s9, 63
    %p142 = por %p140, %p141
    %p143 = scmp.ne.s32.totalorder %s135, %s138
    %p144 = scmp.eq.s32.totalorder %s9, 0
    %p145 = por %p143, %p144
    %p146 = scmp.ne.s32.totalorder %s135, %s138
    %p147 = scmp.eq.s32.totalorder %s14, 63
    %p148 = por %p146, %p147
    %p149 = scmp.ne.s32.totalorder %s138, %s139
    %p150 = scmp.eq.s32.totalorder %s14, 0
    %p151 = por %p149, %p150
    %p152 = scmp.ne.s32.totalorder %s138, %s139
    %p153 = scmp.eq.s32.totalorder %s15, 63
    %p154 = por %p152, %p153
    %p156 = scmp.ne.s32.totalorder %s139, %s155
    %p157 = scmp.eq.s32.totalorder %s15, 0
    %p158 = por %p156, %p157
    %p159 = scmp.le.s32.totalorder 1, %s9
    %p160 = scmp.lt.s32.totalorder %s9, 65
    %p161 = pnand %p159, %p160
    %p162 = pneg %p161
    // Predicated region
    $region9: #{tpu_custom_call.1} parent=5 // pred_check
      _
    $region10: #{tpu_custom_call.1} parent=5 // pred_check_branch
      %164 = sbr.rel (%p161) target = $region12
    $region11: #{tpu_custom_call.1} parent=5 // pred_region
      %s165 = ssub.s32 %s9, 1
    $region12: #{tpu_custom_call.1} parent=5 // pred_fallthru
      _
    %p166 = scmp.lt.s32.totalorder %s9, 64
    // Predicated region
    $region13: #{tpu_custom_call.1} parent=5 // pred_check
      %p167 = pneg %p166
    $region14: #{tpu_custom_call.1} parent=5 // pred_check_branch
      %169 = sbr.rel (%p167) target = $region16
    $region15: #{tpu_custom_call.1} parent=5 // pred_region
      // Predicated region
      $region17: #{tpu_custom_call.1} parent=15 // pred_check
        %p170 = pneg %p41
      $region18: #{tpu_custom_call.1} parent=15 // pred_check_branch
        %172 = sbr.rel (%p170) target = $region20
      $region19: #{tpu_custom_call.1} parent=15 // pred_region
        %s173 = smul.u32 2, %s16
        %p174 = scmp.lt.s32.totalorder %s173, 31
        %s175 = scalar_select %p174, %s173, 31
        %s176 = smul.addr %s175, 4
        %s177 = scalar_lea.vmem %s0, %s176
        %s178 = smul.u32 2, %s16
      $region20: #{tpu_custom_call.1} parent=15 // pred_fallthru
        _
      // Predicated region
      $region21: #{tpu_custom_call.1} parent=15 // pred_check
        %p179 = pneg %p93
      $region22: #{tpu_custom_call.1} parent=15 // pred_check_branch
        %181 = sbr.rel (%p179) target = $region24
      $region23: #{tpu_custom_call.1} parent=15 // pred_region
        %s182 = sadd.s32 %s16, 8
        %p183 = scmp.lt.s32.totalorder %s182, 0
        %s184 = ssub.s32 0, %s182
        %s185 = scalar_select %p183, %s184, %s182
        %s186 = sand.u32 %s185, 15
        %s187 = ssub.s32 0, %s186
        %s188 = scalar_select %p183, %s187, %s186
        %p189 = scmp.ne.s32.totalorder %s188, 0
        %p190 = scmp.lt.s32.totalorder %s188, 0
        %p191 = pnand %p190, %p189
        %p192 = pneg %p191
        %s193 = sadd.s32 %s188, 16
        %s194 = scalar_select %p192, %s193, %s188
        %s195 = smul.u32 2, %s194
        %p196 = scmp.lt.s32.totalorder %s195, 31
        %s197 = scalar_select %p196, %s195, 31
        %s198 = smul.addr %s197, 4
        %s199 = scalar_lea.vmem %s1, %s198
        %s200 = sadd.s32 %s16, 8
        %p201 = scmp.lt.s32.totalorder %s200, 0
        %s202 = ssub.s32 0, %s200
        %s203 = scalar_select %p201, %s202, %s200
        %s204 = sand.u32 %s203, 15
        %s205 = ssub.s32 0, %s204
        %s206 = scalar_select %p201, %s205, %s204
        %p207 = scmp.ne.s32.totalorder %s206, 0
        %p208 = scmp.lt.s32.totalorder %s206, 0
        %p209 = pnand %p208, %p207
        %p210 = pneg %p209
        %s211 = sadd.s32 %s206, 16
        %s212 = scalar_select %p210, %s211, %s206
        %s213 = smul.u32 2, %s212
      $region24: #{tpu_custom_call.1} parent=15 // pred_fallthru
        _
      // Predicated region
      $region25: #{tpu_custom_call.1} parent=15 // pred_check
        %p214 = pneg %p119
      $region26: #{tpu_custom_call.1} parent=15 // pred_check_branch
        %216 = sbr.rel (%p214) target = $region28
      $region27: #{tpu_custom_call.1} parent=15 // pred_region
        %s217 = smul.u32 8, %s17
        %p218 = scmp.lt.s32.totalorder %s217, 31
        %s219 = scalar_select %p218, %s217, 31
        %s220 = smul.addr %s219, 4
        %s221 = scalar_lea.vmem %s2, %s220
        %s222 = smul.u32 8, %s17
      $region28: #{tpu_custom_call.1} parent=15 // pred_fallthru
        _
    $region16: #{tpu_custom_call.1} parent=5 // pred_fallthru
      _
    %p223 = scmp.le.s32.totalorder 1, %s9
    %p224 = scmp.lt.s32.totalorder %s9, 65
    %p225 = pnand %p223, %p224
    %p226 = pneg %p225
    // Predicated region
    $region29: #{tpu_custom_call.1} parent=5 // pred_check
      _
    $region30: #{tpu_custom_call.1} parent=5 // pred_check_branch
      %228 = sbr.rel (%p225) target = $region32
    $region31: #{tpu_custom_call.1} parent=5 // pred_region
      %s229 = ssub.s32 %s9, 1
      %s230 = smul.u32 2, %s18
      %p231 = scmp.lt.s32.totalorder %s230, 31
      %s232 = scalar_select %p231, %s230, 31
      %s233 = smul.addr %s232, 4
      %s234 = scalar_lea.vmem %s0, %s233
      %p235 = pneg %p47
      %p236 = pneg %p44
      %s237 = sadd.s32 %s18, 8
      %p238 = scmp.lt.s32.totalorder %s237, 0
      %s239 = ssub.s32 0, %s237
      %s240 = scalar_select %p238, %s239, %s237
      %s241 = sand.u32 %s240, 15
      %s242 = ssub.s32 0, %s241
      %s243 = scalar_select %p238, %s242, %s241
      %p244 = scmp.ne.s32.totalorder %s243, 0
      %p245 = scmp.lt.s32.totalorder %s243, 0
      %p246 = pnand %p245, %p244
      %p247 = pneg %p246
      %s248 = sadd.s32 %s243, 16
      %s249 = scalar_select %p247, %s248, %s243
      %s250 = smul.u32 2, %s249
      %p251 = scmp.lt.s32.totalorder %s250, 31
      %s252 = scalar_select %p251, %s250, 31
      %s253 = smul.addr %s252, 4
      %s254 = scalar_lea.vmem %s1, %s253
      %p255 = pneg %p99
      %p256 = pneg %p96
      %s257 = smul.u32 8, %s19
      %p258 = scmp.lt.s32.totalorder %s257, 31
      %s259 = scalar_select %p258, %s257, 31
      %s260 = smul.addr %s259, 4
      %s261 = scalar_lea.vmem %s2, %s260
      %p262 = pneg %p125
      %p263 = pneg %p122
      %p264 = pneg %p151
      %p265 = pneg %p148
      %s266 = smul.u32 2, %s18
      %p267 = scmp.lt.s32.totalorder %s266, 31
      %s268 = scalar_select %p267, %s266, 31
      %s269 = smul.addr %s268, 8
      %s270 = scalar_lea.vmem %s3, %s269
      %s271 = smul.u32 2, %s18
      %p272 = scmp.lt.s32.totalorder %s271, 31
      %s273 = scalar_select %p272, %s271, 31
      %s274 = smul.addr %s273, 4
      %s275 = scalar_lea.vmem %s0, %s274
      %s276 = smul.u32 2, %s18
      %s277 = sadd.s32 %s18, 8
      %p278 = scmp.lt.s32.totalorder %s277, 0
      %s279 = ssub.s32 0, %s277
      %s280 = scalar_select %p278, %s279, %s277
      %s281 = sand.u32 %s280, 15
      %s282 = ssub.s32 0, %s281
      %s283 = scalar_select %p278, %s282, %s281
      %p284 = scmp.ne.s32.totalorder %s283, 0
      %p285 = scmp.lt.s32.totalorder %s283, 0
      %p286 = pnand %p285, %p284
      %p287 = pneg %p286
      %s288 = sadd.s32 %s283, 16
      %s289 = scalar_select %p287, %s288, %s283
      %s290 = smul.u32 2, %s289
      %p291 = scmp.lt.s32.totalorder %s290, 31
      %s292 = scalar_select %p291, %s290, 31
      %s293 = smul.addr %s292, 4
      %s294 = scalar_lea.vmem %s1, %s293
      %s295 = sadd.s32 %s18, 8
      %p296 = scmp.lt.s32.totalorder %s295, 0
      %s297 = ssub.s32 0, %s295
      %s298 = scalar_select %p296, %s297, %s295
      %s299 = sand.u32 %s298, 15
      %s300 = ssub.s32 0, %s299
      %s301 = scalar_select %p296, %s300, %s299
      %p302 = scmp.ne.s32.totalorder %s301, 0
      %p303 = scmp.lt.s32.totalorder %s301, 0
      %p304 = pnand %p303, %p302
      %p305 = pneg %p304
      %s306 = sadd.s32 %s301, 16
      %s307 = scalar_select %p305, %s306, %s301
      %s308 = smul.u32 2, %s307
      %s309 = smul.u32 8, %s19
      %p310 = scmp.lt.s32.totalorder %s309, 31
      %s311 = scalar_select %p310, %s309, 31
      %s312 = smul.addr %s311, 4
      %s313 = scalar_lea.vmem %s2, %s312
      %s314 = smul.u32 8, %s19
      %s315 = smul.u32 2, %s18
      %p316 = scmp.lt.s32.totalorder %s315, 31
      %s317 = scalar_select %p316, %s315, 31
      %s318 = smul.addr %s317, 8
      %s319 = scalar_lea.vmem %s3, %s318
      %s320 = smul.u32 2, %s18
      %v322 = vld [vmem:[%s275] sm:$0xf]
      %v323 = vld [vmem:[%s275 + $0x4] sm:$0xf]
      %v324 = vld [vmem:[%s313] sm:$0xf]
      %v325 = vld [vmem:[%s313 + $0x4] sm:$0xf]
      %v326 = vld [vmem:[%s313 + $0x8] sm:$0xf]
      %v327 = vld [vmem:[%s313 + $0xc] sm:$0xf]
      %v328 = vld [vmem:[%s313 + $0x10] sm:$0xf]
      %v329 = vld [vmem:[%s313 + $0x14] sm:$0xf]
      %v330 = vld [vmem:[%s313 + $0x18] sm:$0xf]
      %v331 = vld [vmem:[%s313 + $0x1c] sm:$0xf]
      %v334 = vunpack.c.l.b16 %v322
      %v335 = vunpack.c.l.b16 %v323
      %v336 = vpack.c.b16 %v335, %v334
      %v345 = vunpack.c.l.b16 %v324
      %v346 = vunpack.c.l.b16 %v325
      %v347 = vunpack.c.l.b16 %v326
      %v348 = vunpack.c.l.b16 %v327
      %v349 = vunpack.c.l.b16 %v328
      %v350 = vunpack.c.l.b16 %v329
      %v351 = vunpack.c.l.b16 %v330
      %v352 = vunpack.c.l.b16 %v331
      %v353 = vpack.c.b16 %v346, %v345
      %v354 = vpack.c.b16 %v348, %v347
      %v355 = vpack.c.b16 %v350, %v349
      %v356 = vpack.c.b16 %v352, %v351
      %vm357 = vcmask 261120
      %v359 = vsel %vm357, %v336, 0
      %v362 = vsel %vm357, %v353, 0
      %v365 = vsel %vm357, %v354, 0
      %v368 = vsel %vm357, %v355, 0
      %v371 = vsel %vm357, %v356, 0
      %373 = vmatpush.bf16.xpose.msra.mxu0 0
      %374 = vmatpush.bf16.xpose.msra.mxu0 0
      %375 = vmatpush.bf16.xpose.msra.mxu0 0
      %376 = vmatpush.bf16.xpose.msra.mxu0 0
      %377 = vmatpush.bf16.xpose.msra.mxu0 %v371
      %378 = vmatpush.bf16.xpose.msra.mxu0 %v368
      %379 = vmatpush.bf16.xpose.msra.mxu0 %v365
      %380 = vmatpush.bf16.xpose.msra.mxu0 %v362
      %381 = vmatmul.bf16.gmra.mxu0 %v359
      %v382 = vpop.f32.mrf.mxu0
      %v383 = vadd.f32 0.0, %v382
      %v384 = vpop.f32.mrf.mxu0
      %v385 = vadd.f32 0.0, %v384
      %386 = vdwg.mxu0
      %v387 = vmul.f32 %v383, 1.442695
      %v388 = vpow.pop %v387
      %v389 = vmul.f32 %v385, 1.442695
      %v390 = vpow.pop %v389
      %p391 = scmp.eq.s32.totalorder %s19, 0
      // Predicated region
      $region33: #{tpu_custom_call.1} parent=31 // pred_check
        %p392 = pneg %p391
      $region34: #{tpu_custom_call.1} parent=31 // pred_check_branch
        %394 = sbr.rel (%p392) target = $region36
      $region35: #{tpu_custom_call.1} parent=31 // pred_region
        %vm395 = vcmask 523264
        %396 = vst.msk [vmem:[#allocation2] sm:$0xff] %vm395, 0.0
        %397 = vst.msk [vmem:[#allocation2 + $0x8] sm:$0xff] %vm395, 0.0
      $region36: #{tpu_custom_call.1} parent=31 // pred_fallthru
        _
      %v398 = vld [vmem:[#allocation2] sm:$0xff]
      %v399 = vld [vmem:[#allocation2 + $0x8] sm:$0xff]
      %v400 = vadd.f32 %v398, %v388
      %v401 = vadd.f32 %v399, %v390
      %vm402 = vcmask 523264
      %403 = vst.msk [vmem:[#allocation2] sm:$0xff] %vm402, %v400
      %404 = vst.msk [vmem:[#allocation2 + $0x8] sm:$0xff] %vm402, %v401
      %p405 = scmp.eq.s32.totalorder %s19, 3
      // Predicated region
      $region37: #{tpu_custom_call.1} parent=31 // pred_check
        %p406 = pneg %p405
      $region38: #{tpu_custom_call.1} parent=31 // pred_check_branch
        %408 = sbr.rel (%p406) target = $region40
      $region39: #{tpu_custom_call.1} parent=31 // pred_region
        %v409 = vld [vmem:[#allocation2] sm:$0xff]
        %v410 = vld [vmem:[#allocation2 + $0x8] sm:$0xff]
        %v411 = vsel %vm402, %v409, 0.0
        %412 = vadd.xlane.f32.xlu0 %v411
        %v413 = vpop.xlane.xlu0 %412
        %v414 = vsel %vm402, %v410, 0.0
        %415 = vadd.xlane.f32.xlu0 %v414
        %v416 = vpop.xlane.xlu0 %415
        %v417 = vunpack.c.l.bf16 %v322
        %v418 = vunpack.c.l.bf16 %v323
        %v419 = vld [vmem:[%s294] sm:$0xf]
        %v420 = vld [vmem:[%s294 + $0x4] sm:$0xf]
        %v421 = vunpack.c.l.bf16 %v419
        %v422 = vunpack.c.l.bf16 %v420
        %v423 = vmul.f32 %v417, %v421
        %v424 = vmul.f32 %v418, %v422
        %v425 = vsel %vm357, %v423, 0.0
        %426 = vadd.xlane.f32.xlu0 %v425
        %v427 = vpop.xlane.xlu0 %426
        %v428 = vsel %vm357, %v424, 0.0
        %429 = vadd.xlane.f32.xlu0 %v428
        %v430 = vpop.xlane.xlu0 %429
        %v431 = vmul.f32 %v417, %v417
        %v432 = vmul.f32 %v418, %v418
        %v433 = vsel %vm357, %v431, 0.0
        %434 = vadd.xlane.f32.xlu0 %v433
        %v435 = vpop.xlane.xlu0 %434
        %v436 = vsel %vm357, %v432, 0.0
        %437 = vadd.xlane.f32.xlu0 %v436
        %v438 = vpop.xlane.xlu0 %437
        %v439 = vmul.f32 %v435, 1.442695
        %v440 = vpow.pop %v439
        %v441 = vmul.f32 %v438, 1.442695
        %v442 = vpow.pop %v441
        %v443 = vsub.f32 %v413, %v440
        %v444 = vsub.f32 %v416, %v442
        %v445 = vlog2.pop %v443
        %v446 = vmul.f32 %v445, 0.6931472
        %v447 = vlog2.pop %v444
        %v448 = vmul.f32 %v447, 0.6931472
        %v449 = vsub.f32 %v446, %v427
        %v450 = vsub.f32 %v448, %v430
        %vm451 = vcmask 7168
        %452 = vst.msk [vmem:[%s319] sm:$0xff] %vm451, %v449
        %453 = vst.msk [vmem:[%s319 + $0x8] sm:$0xff] %vm451, %v450
      $region40: #{tpu_custom_call.1} parent=31 // pred_fallthru
        _
      %s454 = smul.u32 2, %s18
      %p455 = scmp.lt.s32.totalorder %s454, 31
      %s456 = scalar_select %p455, %s454, 31
      %s457 = smul.addr %s456, 8
      %s458 = scalar_lea.vmem %s3, %s457
      // Predicated region
      $region41: #{tpu_custom_call.1} parent=31 // pred_check
        %p459 = pneg %p148
      $region42: #{tpu_custom_call.1} parent=31 // pred_check_branch
        %461 = sbr.rel (%p459) target = $region44
      $region43: #{tpu_custom_call.1} parent=31 // pred_region
        %s462 = smul.u32 2, %s18
      $region44: #{tpu_custom_call.1} parent=31 // pred_fallthru
        _
    $region32: #{tpu_custom_call.1} parent=5 // pred_fallthru
      _
    %p463 = scmp.le.s32.totalorder 2, %s9
    // Predicated region
    $region45: #{tpu_custom_call.1} parent=5 // pred_check
      %p464 = pneg %p463
    $region46: #{tpu_custom_call.1} parent=5 // pred_check_branch
      %466 = sbr.rel (%p464) target = $region48
    $region47: #{tpu_custom_call.1} parent=5 // pred_region
      %s467 = ssub.s32 %s9, 2
      // Predicated region
      $region49: #{tpu_custom_call.1} parent=47 // pred_check
        %p468 = pneg %p154
      $region50: #{tpu_custom_call.1} parent=47 // pred_check_branch
        %470 = sbr.rel (%p468) target = $region52
      $region51: #{tpu_custom_call.1} parent=47 // pred_region
        %s471 = smul.u32 2, %s20
        %p472 = scmp.lt.s32.totalorder %s471, 31
        %s473 = scalar_select %p472, %s471, 31
        %s474 = smul.addr %s473, 8
        %s475 = scalar_lea.vmem %s3, %s474
      $region52: #{tpu_custom_call.1} parent=47 // pred_fallthru
        _
    $region48: #{tpu_custom_call.1} parent=5 // pred_fallthru
      _
  $region6: #{tpu_custom_call.1} parent=0 // loop_footer
    %s13 = sadd.s32 1, %s9
  $region7: #{tpu_custom_call.1} parent=0 // loop_footer_branch
    %8 = sbr.rel target = $region3
  $region8: #{tpu_custom_call.1} parent=0 // loop_exit
    _

</llo_original>
